<compile_context>
chip_gen: v5e
topology: v5e:2x2
jax: 0.10.0
libtpu: 0.0.40
codegen_flags: <defaults>
</compile_context>

<pallas_src>
import math

import jax
import jax.numpy as jnp
import numpy as np
from jax import lax
from jax.experimental import pallas as pl
from jax.experimental.pallas import tpu as pltpu

NEG_INF = float(np.finfo(np.float32).min)


def build_rel_pos_idx(qlen, klen, clamp_len):
    """Exact mirror of RelativeMultiheadAttentionMechanism._rel_shift index math.

    Returns R with R[j, i] = relative-position index, shape [klen, qlen]."""
    idx = np.arange(klen)
    rel = np.abs(idx[None, :] - idx[:, None]).astype(np.int64)      # [klen, klen]
    if klen != qlen:
        rel = rel[:, :qlen].copy()                                   # [klen, qlen]
        m = np.tril(np.ones((qlen, klen), dtype=bool), 0).T          # [klen, qlen]
        rel[m] *= -1
        rel = klen - qlen - rel
        rel[rel < 0] *= -1
    if clamp_len > 0:
        rel = np.minimum(rel, clamp_len)
    return rel


def _make_kernel(mlen, qlen, klen, H, d_k, Lp, adim, inv_scale, nbits):
    def kernel(key_ref, wkvq_ref, wo_ref, pext_ref, u_ref, vb_ref, bias_ref,
               cv_ref, aw_ref):
        key_b = key_ref[0]                                            # [klen, kdim] bf16

        # Single fused K/V/Q projection: one lane-dense MXU matmul for all heads.
        kvq = jnp.dot(key_b, wkvq_ref[...],
                      preferred_element_type=jnp.float32)             # [klen, 3*adim]
        k_all = kvq[:, :adim]                                         # [klen, adim]
        v_all = kvq[:, adim:2 * adim]                                 # [klen, adim]
        q_all = kvq[mlen:mlen + qlen, 2 * adim:]                      # [qlen, adim]

        # Fold 1/sqrt(d_k) into the query-side operands (fp32 add, then bf16 for MXU).
        qu = ((q_all + u_ref[...]) * inv_scale).astype(jnp.bfloat16)  # [qlen, adim]
        qv = ((q_all + vb_ref[...]) * inv_scale).astype(jnp.bfloat16)
        k_bf = k_all.astype(jnp.bfloat16)
        v_bf = v_all.astype(jnp.bfloat16)
        pext = pext_ref[...]                                          # [Lp, adim] bf16
        bias = bias_ref[0]                                            # [qlen, klen] fp32

        # Per-head content / position scores (small d_k-contraction matmuls).
        ac_parts, bd_parts = [], []
        for h in range(H):
            sl = slice(h * d_k, (h + 1) * d_k)
            # AC[i, j] = (q_i + u) . k_j / sqrt(d_k)
            ac_parts.append(lax.dot_general(qu[:, sl], k_bf[:, sl],
                                            (((1,), (1,)), ((), ())),
                                            preferred_element_type=jnp.float32))
            # Position score against the pre-gathered relative table: column s of
            # bd_ext corresponds to relative offset s = j - i + qlen - 1.
            bd_parts.append(lax.dot_general(qv[:, sl], pext[:, sl],
                                            (((1,), (1,)), ((), ())),
                                            preferred_element_type=jnp.float32))

        # Stack heads along sublanes so the relative shift / bias add / softmax
        # each run once on a [H*qlen, ...] slab instead of H tiny tiles.
        ac = jnp.concatenate(ac_parts, axis=0)                        # [H*qlen, klen]
        bd_ext = jnp.concatenate(bd_parts, axis=0)                    # [H*qlen, Lp]

        # Relative shift: right-roll query row i by i (log2 bit decomposition), then
        # take the klen columns starting at qlen-1.  No wraparound is ever read.
        row_ids = lax.broadcasted_iota(jnp.int32, (qlen, Lp), 0)
        rows = jnp.concatenate([row_ids] * H, axis=0)                 # [H*qlen, Lp]
        for b in range(nbits):
            sel = (rows & (1 << b)) != 0
            bd_ext = jnp.where(sel, jnp.roll(bd_ext, 1 << b, axis=-1), bd_ext)
        bd = bd_ext[:, qlen - 1:qlen - 1 + klen]                      # [H*qlen, klen]

        # Masked, scaled logits + row softmax for all heads at once.
        e = ac + bd + jnp.concatenate([bias] * H, axis=0)
        e = e - jnp.max(e, axis=-1, keepdims=True)
        p = jnp.exp(e)
        aw = p * pl.reciprocal(jnp.sum(p, axis=-1, keepdims=True), approx=True)

        # Per-head attention-weight writeback + context matmul.
        ctx_parts = []
        for h in range(H):
            sl = slice(h * d_k, (h + 1) * d_k)
            aw_h = aw[h * qlen:(h + 1) * qlen, :]                     # [qlen, klen]
            aw_ref[0, h] = aw_h
            ctx_parts.append(jnp.dot(aw_h.astype(jnp.bfloat16), v_bf[:, sl],
                                     preferred_element_type=jnp.float32))  # [qlen, d_k]

        # Single fused output projection for all heads.
        ctx = jnp.concatenate(ctx_parts, axis=-1).astype(jnp.bfloat16)     # [qlen, adim]
        cv_ref[0] = jnp.dot(ctx, wo_ref[...], preferred_element_type=jnp.float32)

    return kernel


def relative_mha(key, query, pos_embs, mask, params, u_bias, v_bias, *, clamp_len=-1):
    """Pallas forward of RelativeMultiheadAttentionMechanism (xl_like=True, eval mode)."""
    B, klen, kdim = key.shape
    qlen = query.shape[1]
    mlen = klen - qlen
    H, d_k = u_bias.shape
    adim = H * d_k
    odim = params["w_out"].shape[0]
    inv_scale = 1.0 / math.sqrt(d_k)
    bf16 = jnp.bfloat16

    # bf16 MXU operands (fp32 accumulation inside the kernel).
    key_bf = key.astype(bf16)
    wk = params["w_key"].T.astype(bf16)                               # [kdim, adim]
    wv = params["w_value"].T.astype(bf16)
    wq = params["w_query"].T.astype(bf16)
    wo = params["w_out"].T.astype(bf16)                               # [adim, odim]
    # Fuse K/V/Q into one lane-dense RHS so the kernel does a single projection matmul.
    wkvq = jnp.concatenate([wk, wv, wq], axis=1)                      # [kdim, 3*adim]

    # Positional projection hoisted out of the kernel (batch/head independent), then
    # pre-gathered so that column s of the in-kernel BD matmul corresponds to the
    # relative index clamp(|klen - 1 - s|) — exactly the module's _rel_shift gather.
    p_proj = jnp.dot(pos_embs.astype(jnp.float32),
                     params["w_pos"].T.astype(jnp.float32))            # [klen, adim]
    L = qlen + klen - 1
    sid = np.abs(klen - 1 - np.arange(L))
    if clamp_len > 0:
        sid = np.minimum(sid, clamp_len)
    Lp = ((L + 127) // 128) * 128                                      # lane-dense width
    p_ext = jnp.zeros((Lp, adim), jnp.float32).at[:L].set(p_proj[jnp.asarray(sid)])
    p_ext = p_ext.astype(bf16)

    u_vec = u_bias.reshape(1, adim).astype(jnp.float32)
    v_vec = v_bias.reshape(1, adim).astype(jnp.float32)
    # Additive mask bias (adding finfo.min to O(1) scores rounds to finfo.min exactly,
    # matching masked_fill in the reference).
    bias = jnp.where(mask == 0, NEG_INF, 0.0).astype(jnp.float32)      # [B, qlen, klen]

    nbits = (qlen - 1).bit_length()
    kernel = _make_kernel(mlen, qlen, klen, H, d_k, Lp, adim, inv_scale, nbits)

    cv, aw = pl.pallas_call(
        kernel,
        out_shape=(jax.ShapeDtypeStruct((B, qlen, odim), jnp.float32),
                   jax.ShapeDtypeStruct((B, H, qlen, klen), jnp.float32)),
        grid=(B,),
        in_specs=[
            pl.BlockSpec((1, klen, kdim), lambda b: (b, 0, 0)),        # key (per batch)
            pl.BlockSpec((kdim, 3 * adim), lambda b: (0, 0)),          # [wk|wv|wq]^T (invariant)
            pl.BlockSpec((adim, odim), lambda b: (0, 0)),              # w_out^T
            pl.BlockSpec((Lp, adim), lambda b: (0, 0)),                # gathered pos proj
            pl.BlockSpec((1, adim), lambda b: (0, 0)),                 # u bias (flat)
            pl.BlockSpec((1, adim), lambda b: (0, 0)),                 # v bias (flat)
            pl.BlockSpec((1, qlen, klen), lambda b: (b, 0, 0)),        # additive mask bias
        ],
        out_specs=(
            pl.BlockSpec((1, qlen, odim), lambda b: (b, 0, 0)),        # cv
            pl.BlockSpec((1, H, qlen, klen), lambda b: (b, 0, 0, 0)),  # aw
        ),
        compiler_params=pltpu.CompilerParams(
            dimension_semantics=("parallel",),
            vmem_limit_bytes=32 * 1024 * 1024),
    )(key_bf, wkvq, wo, p_ext, u_vec, v_vec, bias)
    return cv, aw


def reference_forward(key, query, pos_embs, mask, params, u_bias, v_bias, *, clamp_len=-1):
    """Pure-JAX mirror of the PyTorch forward (eval mode), used to verify the kernel."""
    B, klen, kdim = key.shape
    qlen = query.shape[1]
    H, d_k = u_bias.shape
    scale = math.sqrt(d_k)
    hp = jax.lax.Precision.HIGHEST

    k = jnp.dot(key, params["w_key"].T, precision=hp).reshape(B, klen, H, d_k)
    v = jnp.dot(key, params["w_value"].T, precision=hp).reshape(B, klen, H, d_k)
    q = jnp.dot(key[:, -qlen:], params["w_query"].T, precision=hp).reshape(B, qlen, H, d_k)
    p = jnp.dot(pos_embs, params["w_pos"].T, precision=hp).reshape(klen, H, d_k)

    ac = jnp.einsum('bihd,bjhd->bijh', q + u_bias[None, None], k, precision=hp)
    bd = jnp.einsum('bihd,jhd->bijh', q + v_bias[None, None], p, precision=hp)

    R = build_rel_pos_idx(qlen, klen, clamp_len)                     # [klen, qlen]
    idx = jnp.broadcast_to(jnp.asarray(R.T, dtype=jnp.int32)[None, :, :, None], bd.shape)
    bd = jnp.take_along_axis(bd, idx, axis=2)                        # PyTorch-style gather

    e = (ac + bd) / scale
    e = jnp.where(mask[..., None] == 0, NEG_INF, e)
    aw = jax.nn.softmax(e, axis=2)
    cv = jnp.einsum('bijh,bjhd->bihd', aw, v, precision=hp).reshape(B, qlen, H * d_k)
    cv = jnp.dot(cv, params["w_out"].T, precision=hp)
    return cv, jnp.transpose(aw, (0, 3, 1, 2))


if __name__ == "__main__":
    # small shapes: kdim = qdim = adim = odim = 32, H = 4, d_k = 8
    B, H, d_k = 2, 4, 8
    adim = H * d_k
    kdim = qdim = 32
    odim = 32
    qlen, mlen = 8, 4
    klen = qlen + mlen

    root = jax.random.PRNGKey(0)
    ks = jax.random.split(root, 10)

    def xavier(k, shape, gain=1.0):
        fan_out, fan_in = shape
        a = gain * math.sqrt(6.0 / (fan_in + fan_out))
        return jax.random.uniform(k, shape, minval=-a, maxval=a, dtype=jnp.float32)

    g = 1.0 / math.sqrt(2.0)
    params = {
        "w_key":   xavier(ks[0], (adim, kdim), g),
        "w_value": xavier(ks[1], (adim, kdim), g),
        "w_query": xavier(ks[2], (adim, qdim), g),
        "w_out":   xavier(ks[3], (odim, adim)),
        "w_pos":   xavier(ks[4], (adim, qdim)),     # xl_like=True
    }
    u_bias = 0.02 * jax.random.normal(ks[5], (H, d_k), dtype=jnp.float32)
    v_bias = 0.02 * jax.random.normal(ks[6], (H, d_k), dtype=jnp.float32)

    key_in = jax.random.normal(ks[7], (B, klen, kdim), dtype=jnp.float32)
    query_in = key_in[:, -qlen:]                   # module only uses query for its length
    pos_embs = jax.random.normal(ks[8], (klen, kdim), dtype=jnp.float32)

    # causal-with-memory mask: query i attends to key positions j <= mlen + i
    allowed = np.arange(klen)[None, :] <= (mlen + np.arange(qlen)[:, None])
    mask = jnp.asarray(np.broadcast_to(allowed, (B, qlen, klen)).astype(np.int32))

    cv, aw = relative_mha(key_in, query_in, pos_embs, mask, params, u_bias, v_bias)
    (cv, aw) = jax.block_until_ready((cv, aw))

    cv_ref, aw_ref = reference_forward(key_in, query_in, pos_embs, mask,
                                       params, u_bias, v_bias)
    assert cv.shape == (B, qlen, odim) and aw.shape == (B, H, qlen, klen)
    # bf16 MXU operands vs fp32/HIGHEST reference -> slightly looser tolerance.
    assert np.allclose(np.asarray(cv), np.asarray(cv_ref), rtol=3e-2, atol=3e-2)
    assert np.allclose(np.asarray(aw), np.asarray(aw_ref), rtol=3e-2, atol=3e-2)
    print("KERNEL_OK")
</pallas_src>

<mosaic_0001>
module attributes {stable_mosaic.version = 11 : i64} {
  func.func @kernel(%arg0: i32, %arg1: memref<1x12x32xbf16, #tpu.memory_space<vmem>>, %arg2: memref<32x96xbf16, #tpu.memory_space<vmem>>, %arg3: memref<32x32xbf16, #tpu.memory_space<vmem>>, %arg4: memref<128x32xbf16, #tpu.memory_space<vmem>>, %arg5: memref<1x32xf32, #tpu.memory_space<vmem>>, %arg6: memref<1x32xf32, #tpu.memory_space<vmem>>, %arg7: memref<1x8x12xf32, #tpu.memory_space<vmem>>, %arg8: memref<1x8x32xf32, #tpu.memory_space<vmem>>, %arg9: memref<1x4x8x12xf32, #tpu.memory_space<vmem>>) attributes {dimension_semantics = [#tpu.dimension_semantics<parallel>], iteration_bounds = array<i64: 2>, scalar_prefetch = 0 : i64, scratch_operands = 0 : i64, tpu.core_type = #tpu.core_type<tc>, window_params = [{transform_indices = @transform_0, window_bounds = array<i64: 1, 12, 32>}, {pipeline_mode = #tpu.pipeline_mode<synchronous>, transform_indices = @transform_1, window_bounds = array<i64: 32, 96>}, {pipeline_mode = #tpu.pipeline_mode<synchronous>, transform_indices = @transform_2, window_bounds = array<i64: 32, 32>}, {pipeline_mode = #tpu.pipeline_mode<synchronous>, transform_indices = @transform_3, window_bounds = array<i64: 128, 32>}, {pipeline_mode = #tpu.pipeline_mode<synchronous>, transform_indices = @transform_4, window_bounds = array<i64: 1, 32>}, {pipeline_mode = #tpu.pipeline_mode<synchronous>, transform_indices = @transform_5, window_bounds = array<i64: 1, 32>}, {transform_indices = @transform_6, window_bounds = array<i64: 1, 8, 12>}, {transform_indices = @transform_7, window_bounds = array<i64: 1, 8, 32>}, {transform_indices = @transform_8, window_bounds = array<i64: 1, 4, 8, 12>}]} {
    %c0 = arith.constant 0 : index
    %c0_0 = arith.constant 0 : index
    %c0_1 = arith.constant 0 : index
    %0 = vector.load %arg1[%c0, %c0_0, %c0_1] : memref<1x12x32xbf16, #tpu.memory_space<vmem>>, vector<1x12x32xbf16>
    %1 = vector.shape_cast %0 : vector<1x12x32xbf16> to vector<12x32xbf16>
    %c0_2 = arith.constant 0 : index
    %c0_3 = arith.constant 0 : index
    %2 = vector.load %arg2[%c0_2, %c0_3] : memref<32x96xbf16, #tpu.memory_space<vmem>>, vector<32x96xbf16>
    %cst = arith.constant dense<0.000000e+00> : vector<12x96xf32>
    %3 = tpu.matmul %1, %2, %cst {dimension_numbers = #tpu.dot_dimension_numbers<[1], [0], [0], [1], [0, 0, 1, 1], [], []>} : vector<12x32xbf16>, vector<32x96xbf16>, vector<12x96xf32> -> vector<12x96xf32>
    %4 = vector.extract_strided_slice %3 {offsets = [0, 0], sizes = [12, 32], strides = [1, 1]} : vector<12x96xf32> to vector<12x32xf32>
    %5 = vector.extract_strided_slice %3 {offsets = [0, 32], sizes = [12, 32], strides = [1, 1]} : vector<12x96xf32> to vector<12x32xf32>
    %6 = vector.extract_strided_slice %3 {offsets = [4, 64], sizes = [8, 32], strides = [1, 1]} : vector<12x96xf32> to vector<8x32xf32>
    %c0_4 = arith.constant 0 : index
    %c0_5 = arith.constant 0 : index
    %7 = vector.load %arg5[%c0_4, %c0_5] : memref<1x32xf32, #tpu.memory_space<vmem>>, vector<1x32xf32>
    %8 = vector.broadcast %7 : vector<1x32xf32> to vector<8x32xf32>
    %9 = arith.addf %6, %8 : vector<8x32xf32>
    %cst_6 = arith.constant 0.353553385 : f32
    %10 = vector.broadcast %cst_6 : f32 to vector<8x32xf32>
    %11 = arith.mulf %9, %10 : vector<8x32xf32>
    %12 = arith.truncf %11 : vector<8x32xf32> to vector<8x32xbf16>
    %c0_7 = arith.constant 0 : index
    %c0_8 = arith.constant 0 : index
    %13 = vector.load %arg6[%c0_7, %c0_8] : memref<1x32xf32, #tpu.memory_space<vmem>>, vector<1x32xf32>
    %14 = vector.broadcast %13 : vector<1x32xf32> to vector<8x32xf32>
    %15 = arith.addf %6, %14 : vector<8x32xf32>
    %cst_9 = arith.constant 0.353553385 : f32
    %16 = vector.broadcast %cst_9 : f32 to vector<8x32xf32>
    %17 = arith.mulf %15, %16 : vector<8x32xf32>
    %18 = arith.truncf %17 : vector<8x32xf32> to vector<8x32xbf16>
    %19 = arith.truncf %4 : vector<12x32xf32> to vector<12x32xbf16>
    %20 = arith.truncf %5 : vector<12x32xf32> to vector<12x32xbf16>
    %c0_10 = arith.constant 0 : index
    %c0_11 = arith.constant 0 : index
    %21 = vector.load %arg4[%c0_10, %c0_11] : memref<128x32xbf16, #tpu.memory_space<vmem>>, vector<128x32xbf16>
    %c0_12 = arith.constant 0 : index
    %c0_13 = arith.constant 0 : index
    %c0_14 = arith.constant 0 : index
    %22 = vector.load %arg7[%c0_12, %c0_13, %c0_14] : memref<1x8x12xf32, #tpu.memory_space<vmem>>, vector<1x8x12xf32>
    %23 = vector.shape_cast %22 : vector<1x8x12xf32> to vector<8x12xf32>
    %24 = vector.extract_strided_slice %12 {offsets = [0, 0], sizes = [8, 8], strides = [1, 1]} : vector<8x32xbf16> to vector<8x8xbf16>
    %25 = vector.extract_strided_slice %19 {offsets = [0, 0], sizes = [12, 8], strides = [1, 1]} : vector<12x32xbf16> to vector<12x8xbf16>
    %cst_15 = arith.constant dense<0.000000e+00> : vector<8x12xf32>
    %26 = tpu.matmul %24, %25, %cst_15 {dimension_numbers = #tpu.dot_dimension_numbers<[1], [1], [0], [0], [0, 0, 1, 0], [], []>} : vector<8x8xbf16>, vector<12x8xbf16>, vector<8x12xf32> -> vector<8x12xf32>
    %27 = vector.extract_strided_slice %18 {offsets = [0, 0], sizes = [8, 8], strides = [1, 1]} : vector<8x32xbf16> to vector<8x8xbf16>
    %28 = vector.extract_strided_slice %21 {offsets = [0, 0], sizes = [128, 8], strides = [1, 1]} : vector<128x32xbf16> to vector<128x8xbf16>
    %cst_16 = arith.constant dense<0.000000e+00> : vector<8x128xf32>
    %29 = tpu.matmul %27, %28, %cst_16 {dimension_numbers = #tpu.dot_dimension_numbers<[1], [1], [0], [0], [0, 0, 1, 0], [], []>} : vector<8x8xbf16>, vector<128x8xbf16>, vector<8x128xf32> -> vector<8x128xf32>
    %30 = vector.extract_strided_slice %12 {offsets = [0, 8], sizes = [8, 8], strides = [1, 1]} : vector<8x32xbf16> to vector<8x8xbf16>
    %31 = vector.extract_strided_slice %19 {offsets = [0, 8], sizes = [12, 8], strides = [1, 1]} : vector<12x32xbf16> to vector<12x8xbf16>
    %cst_17 = arith.constant dense<0.000000e+00> : vector<8x12xf32>
    %32 = tpu.matmul %30, %31, %cst_17 {dimension_numbers = #tpu.dot_dimension_numbers<[1], [1], [0], [0], [0, 0, 1, 0], [], []>} : vector<8x8xbf16>, vector<12x8xbf16>, vector<8x12xf32> -> vector<8x12xf32>
    %33 = vector.extract_strided_slice %18 {offsets = [0, 8], sizes = [8, 8], strides = [1, 1]} : vector<8x32xbf16> to vector<8x8xbf16>
    %34 = vector.extract_strided_slice %21 {offsets = [0, 8], sizes = [128, 8], strides = [1, 1]} : vector<128x32xbf16> to vector<128x8xbf16>
    %cst_18 = arith.constant dense<0.000000e+00> : vector<8x128xf32>
    %35 = tpu.matmul %33, %34, %cst_18 {dimension_numbers = #tpu.dot_dimension_numbers<[1], [1], [0], [0], [0, 0, 1, 0], [], []>} : vector<8x8xbf16>, vector<128x8xbf16>, vector<8x128xf32> -> vector<8x128xf32>
    %36 = vector.extract_strided_slice %12 {offsets = [0, 16], sizes = [8, 8], strides = [1, 1]} : vector<8x32xbf16> to vector<8x8xbf16>
    %37 = vector.extract_strided_slice %19 {offsets = [0, 16], sizes = [12, 8], strides = [1, 1]} : vector<12x32xbf16> to vector<12x8xbf16>
    %cst_19 = arith.constant dense<0.000000e+00> : vector<8x12xf32>
    %38 = tpu.matmul %36, %37, %cst_19 {dimension_numbers = #tpu.dot_dimension_numbers<[1], [1], [0], [0], [0, 0, 1, 0], [], []>} : vector<8x8xbf16>, vector<12x8xbf16>, vector<8x12xf32> -> vector<8x12xf32>
    %39 = vector.extract_strided_slice %18 {offsets = [0, 16], sizes = [8, 8], strides = [1, 1]} : vector<8x32xbf16> to vector<8x8xbf16>
    %40 = vector.extract_strided_slice %21 {offsets = [0, 16], sizes = [128, 8], strides = [1, 1]} : vector<128x32xbf16> to vector<128x8xbf16>
    %cst_20 = arith.constant dense<0.000000e+00> : vector<8x128xf32>
    %41 = tpu.matmul %39, %40, %cst_20 {dimension_numbers = #tpu.dot_dimension_numbers<[1], [1], [0], [0], [0, 0, 1, 0], [], []>} : vector<8x8xbf16>, vector<128x8xbf16>, vector<8x128xf32> -> vector<8x128xf32>
    %42 = vector.extract_strided_slice %12 {offsets = [0, 24], sizes = [8, 8], strides = [1, 1]} : vector<8x32xbf16> to vector<8x8xbf16>
    %43 = vector.extract_strided_slice %19 {offsets = [0, 24], sizes = [12, 8], strides = [1, 1]} : vector<12x32xbf16> to vector<12x8xbf16>
    %cst_21 = arith.constant dense<0.000000e+00> : vector<8x12xf32>
    %44 = tpu.matmul %42, %43, %cst_21 {dimension_numbers = #tpu.dot_dimension_numbers<[1], [1], [0], [0], [0, 0, 1, 0], [], []>} : vector<8x8xbf16>, vector<12x8xbf16>, vector<8x12xf32> -> vector<8x12xf32>
    %45 = vector.extract_strided_slice %18 {offsets = [0, 24], sizes = [8, 8], strides = [1, 1]} : vector<8x32xbf16> to vector<8x8xbf16>
    %46 = vector.extract_strided_slice %21 {offsets = [0, 24], sizes = [128, 8], strides = [1, 1]} : vector<128x32xbf16> to vector<128x8xbf16>
    %cst_22 = arith.constant dense<0.000000e+00> : vector<8x128xf32>
    %47 = tpu.matmul %45, %46, %cst_22 {dimension_numbers = #tpu.dot_dimension_numbers<[1], [1], [0], [0], [0, 0, 1, 0], [], []>} : vector<8x8xbf16>, vector<128x8xbf16>, vector<8x128xf32> -> vector<8x128xf32>
    %48 = tpu.concatenate %26, %32, %38, %44 in 0 : vector<8x12xf32>, vector<8x12xf32>, vector<8x12xf32>, vector<8x12xf32> -> vector<32x12xf32>
    %49 = tpu.concatenate %29, %35, %41, %47 in 0 : vector<8x128xf32>, vector<8x128xf32>, vector<8x128xf32>, vector<8x128xf32> -> vector<32x128xf32>
    %50 = tpu.iota {dimensions = array<i32: 0>} : vector<8x128xi32>
    %51 = tpu.concatenate %50, %50, %50, %50 in 0 : vector<8x128xi32>, vector<8x128xi32>, vector<8x128xi32>, vector<8x128xi32> -> vector<32x128xi32>
    %c1_i32 = arith.constant 1 : i32
    %52 = vector.broadcast %c1_i32 : i32 to vector<32x128xi32>
    %53 = arith.andi %51, %52 : vector<32x128xi32>
    %c0_i32 = arith.constant 0 : i32
    %54 = vector.broadcast %c0_i32 : i32 to vector<32x128xi32>
    %55 = arith.cmpi ne, %53, %54 : vector<32x128xi32>
    %56 = vector.extract_strided_slice %49 {offsets = [0, 127], sizes = [32, 1], strides = [1, 1]} : vector<32x128xf32> to vector<32x1xf32>
    %57 = vector.extract_strided_slice %49 {offsets = [0, 0], sizes = [32, 127], strides = [1, 1]} : vector<32x128xf32> to vector<32x127xf32>
    %58 = tpu.concatenate %56, %57 in 1 : vector<32x1xf32>, vector<32x127xf32> -> vector<32x128xf32>
    %59 = arith.select %55, %58, %49 : vector<32x128xi1>, vector<32x128xf32>
    %c2_i32 = arith.constant 2 : i32
    %60 = vector.broadcast %c2_i32 : i32 to vector<32x128xi32>
    %61 = arith.andi %51, %60 : vector<32x128xi32>
    %c0_i32_23 = arith.constant 0 : i32
    %62 = vector.broadcast %c0_i32_23 : i32 to vector<32x128xi32>
    %63 = arith.cmpi ne, %61, %62 : vector<32x128xi32>
    %64 = vector.extract_strided_slice %59 {offsets = [0, 126], sizes = [32, 2], strides = [1, 1]} : vector<32x128xf32> to vector<32x2xf32>
    %65 = vector.extract_strided_slice %59 {offsets = [0, 0], sizes = [32, 126], strides = [1, 1]} : vector<32x128xf32> to vector<32x126xf32>
    %66 = tpu.concatenate %64, %65 in 1 : vector<32x2xf32>, vector<32x126xf32> -> vector<32x128xf32>
    %67 = arith.select %63, %66, %59 : vector<32x128xi1>, vector<32x128xf32>
    %c4_i32 = arith.constant 4 : i32
    %68 = vector.broadcast %c4_i32 : i32 to vector<32x128xi32>
    %69 = arith.andi %51, %68 : vector<32x128xi32>
    %c0_i32_24 = arith.constant 0 : i32
    %70 = vector.broadcast %c0_i32_24 : i32 to vector<32x128xi32>
    %71 = arith.cmpi ne, %69, %70 : vector<32x128xi32>
    %72 = vector.extract_strided_slice %67 {offsets = [0, 124], sizes = [32, 4], strides = [1, 1]} : vector<32x128xf32> to vector<32x4xf32>
    %73 = vector.extract_strided_slice %67 {offsets = [0, 0], sizes = [32, 124], strides = [1, 1]} : vector<32x128xf32> to vector<32x124xf32>
    %74 = tpu.concatenate %72, %73 in 1 : vector<32x4xf32>, vector<32x124xf32> -> vector<32x128xf32>
    %75 = arith.select %71, %74, %67 : vector<32x128xi1>, vector<32x128xf32>
    %76 = vector.extract_strided_slice %75 {offsets = [0, 7], sizes = [32, 12], strides = [1, 1]} : vector<32x128xf32> to vector<32x12xf32>
    %77 = arith.addf %48, %76 : vector<32x12xf32>
    %78 = tpu.concatenate %23, %23, %23, %23 in 0 : vector<8x12xf32>, vector<8x12xf32>, vector<8x12xf32>, vector<8x12xf32> -> vector<32x12xf32>
    %79 = arith.addf %77, %78 : vector<32x12xf32>
    %cst_25 = arith.constant dense<0xFF800000> : vector<32xf32>
    %80 = vector.multi_reduction <maximumf>, %79, %cst_25 [1] : vector<32x12xf32> to vector<32xf32>
    %81 = vector.shape_cast %80 : vector<32xf32> to vector<32x1xf32>
    %82 = vector.broadcast %81 : vector<32x1xf32> to vector<32x12xf32>
    %83 = arith.subf %79, %82 : vector<32x12xf32>
    %84 = math.exp %83 : vector<32x12xf32>
    %cst_26 = arith.constant dense<0.000000e+00> : vector<32xf32>
    %85 = vector.multi_reduction <add>, %84, %cst_26 [1] : vector<32x12xf32> to vector<32xf32>
    %86 = vector.shape_cast %85 : vector<32xf32> to vector<32x1xf32>
    %87 = tpu.reciprocal %86 {approx = true} : vector<32x1xf32> -> vector<32x1xf32>
    %88 = vector.broadcast %87 : vector<32x1xf32> to vector<32x12xf32>
    %89 = arith.mulf %84, %88 : vector<32x12xf32>
    %90 = vector.extract_strided_slice %89 {offsets = [0, 0], sizes = [8, 12], strides = [1, 1]} : vector<32x12xf32> to vector<8x12xf32>
    %c0_27 = arith.constant 0 : index
    %c0_28 = arith.constant 0 : index
    %c0_29 = arith.constant 0 : index
    %c0_30 = arith.constant 0 : index
    %91 = vector.load %arg9[%c0_27, %c0_28, %c0_29, %c0_30] : memref<1x4x8x12xf32, #tpu.memory_space<vmem>>, vector<1x1x8x12xf32>
    %92 = vector.shape_cast %91 : vector<1x1x8x12xf32> to vector<8x12xf32>
    %93 = vector.shape_cast %90 : vector<8x12xf32> to vector<1x1x8x12xf32>
    tpu.vector_store %arg9[%c0_27, %c0_28, %c0_29, %c0_30], %93 {strides = array<i32>} : memref<1x4x8x12xf32, #tpu.memory_space<vmem>>, vector<1x1x8x12xf32>,
    %94 = arith.truncf %90 : vector<8x12xf32> to vector<8x12xbf16>
    %95 = vector.extract_strided_slice %20 {offsets = [0, 0], sizes = [12, 8], strides = [1, 1]} : vector<12x32xbf16> to vector<12x8xbf16>
    %cst_31 = arith.constant dense<0.000000e+00> : vector<8x8xf32>
    %96 = tpu.matmul %94, %95, %cst_31 {dimension_numbers = #tpu.dot_dimension_numbers<[1], [0], [0], [1], [0, 0, 1, 1], [], []>} : vector<8x12xbf16>, vector<12x8xbf16>, vector<8x8xf32> -> vector<8x8xf32>
    %97 = vector.extract_strided_slice %89 {offsets = [8, 0], sizes = [8, 12], strides = [1, 1]} : vector<32x12xf32> to vector<8x12xf32>
    %c0_32 = arith.constant 0 : index
    %c1 = arith.constant 1 : index
    %c0_33 = arith.constant 0 : index
    %c0_34 = arith.constant 0 : index
    %98 = vector.load %arg9[%c0_32, %c1, %c0_33, %c0_34] : memref<1x4x8x12xf32, #tpu.memory_space<vmem>>, vector<1x1x8x12xf32>
    %99 = vector.shape_cast %98 : vector<1x1x8x12xf32> to vector<8x12xf32>
    %100 = vector.shape_cast %97 : vector<8x12xf32> to vector<1x1x8x12xf32>
    tpu.vector_store %arg9[%c0_32, %c1, %c0_33, %c0_34], %100 {strides = array<i32>} : memref<1x4x8x12xf32, #tpu.memory_space<vmem>>, vector<1x1x8x12xf32>,
    %101 = arith.truncf %97 : vector<8x12xf32> to vector<8x12xbf16>
    %102 = vector.extract_strided_slice %20 {offsets = [0, 8], sizes = [12, 8], strides = [1, 1]} : vector<12x32xbf16> to vector<12x8xbf16>
    %cst_35 = arith.constant dense<0.000000e+00> : vector<8x8xf32>
    %103 = tpu.matmul %101, %102, %cst_35 {dimension_numbers = #tpu.dot_dimension_numbers<[1], [0], [0], [1], [0, 0, 1, 1], [], []>} : vector<8x12xbf16>, vector<12x8xbf16>, vector<8x8xf32> -> vector<8x8xf32>
    %104 = vector.extract_strided_slice %89 {offsets = [16, 0], sizes = [8, 12], strides = [1, 1]} : vector<32x12xf32> to vector<8x12xf32>
    %c0_36 = arith.constant 0 : index
    %c2 = arith.constant 2 : index
    %c0_37 = arith.constant 0 : index
    %c0_38 = arith.constant 0 : index
    %105 = vector.load %arg9[%c0_36, %c2, %c0_37, %c0_38] : memref<1x4x8x12xf32, #tpu.memory_space<vmem>>, vector<1x1x8x12xf32>
    %106 = vector.shape_cast %105 : vector<1x1x8x12xf32> to vector<8x12xf32>
    %107 = vector.shape_cast %104 : vector<8x12xf32> to vector<1x1x8x12xf32>
    tpu.vector_store %arg9[%c0_36, %c2, %c0_37, %c0_38], %107 {strides = array<i32>} : memref<1x4x8x12xf32, #tpu.memory_space<vmem>>, vector<1x1x8x12xf32>,
    %108 = arith.truncf %104 : vector<8x12xf32> to vector<8x12xbf16>
    %109 = vector.extract_strided_slice %20 {offsets = [0, 16], sizes = [12, 8], strides = [1, 1]} : vector<12x32xbf16> to vector<12x8xbf16>
    %cst_39 = arith.constant dense<0.000000e+00> : vector<8x8xf32>
    %110 = tpu.matmul %108, %109, %cst_39 {dimension_numbers = #tpu.dot_dimension_numbers<[1], [0], [0], [1], [0, 0, 1, 1], [], []>} : vector<8x12xbf16>, vector<12x8xbf16>, vector<8x8xf32> -> vector<8x8xf32>
    %111 = vector.extract_strided_slice %89 {offsets = [24, 0], sizes = [8, 12], strides = [1, 1]} : vector<32x12xf32> to vector<8x12xf32>
    %c0_40 = arith.constant 0 : index
    %c3 = arith.constant 3 : index
    %c0_41 = arith.constant 0 : index
    %c0_42 = arith.constant 0 : index
    %112 = vector.load %arg9[%c0_40, %c3, %c0_41, %c0_42] : memref<1x4x8x12xf32, #tpu.memory_space<vmem>>, vector<1x1x8x12xf32>
    %113 = vector.shape_cast %112 : vector<1x1x8x12xf32> to vector<8x12xf32>
    %114 = vector.shape_cast %111 : vector<8x12xf32> to vector<1x1x8x12xf32>
    tpu.vector_store %arg9[%c0_40, %c3, %c0_41, %c0_42], %114 {strides = array<i32>} : memref<1x4x8x12xf32, #tpu.memory_space<vmem>>, vector<1x1x8x12xf32>,
    %115 = arith.truncf %111 : vector<8x12xf32> to vector<8x12xbf16>
    %116 = vector.extract_strided_slice %20 {offsets = [0, 24], sizes = [12, 8], strides = [1, 1]} : vector<12x32xbf16> to vector<12x8xbf16>
    %cst_43 = arith.constant dense<0.000000e+00> : vector<8x8xf32>
    %117 = tpu.matmul %115, %116, %cst_43 {dimension_numbers = #tpu.dot_dimension_numbers<[1], [0], [0], [1], [0, 0, 1, 1], [], []>} : vector<8x12xbf16>, vector<12x8xbf16>, vector<8x8xf32> -> vector<8x8xf32>
    %118 = tpu.concatenate %96, %103, %110, %117 in 1 : vector<8x8xf32>, vector<8x8xf32>, vector<8x8xf32>, vector<8x8xf32> -> vector<8x32xf32>
    %119 = arith.truncf %118 : vector<8x32xf32> to vector<8x32xbf16>
    %c0_44 = arith.constant 0 : index
    %c0_45 = arith.constant 0 : index
    %120 = vector.load %arg3[%c0_44, %c0_45] : memref<32x32xbf16, #tpu.memory_space<vmem>>, vector<32x32xbf16>
    %cst_46 = arith.constant dense<0.000000e+00> : vector<8x32xf32>
    %121 = tpu.matmul %119, %120, %cst_46 {dimension_numbers = #tpu.dot_dimension_numbers<[1], [0], [0], [1], [0, 0, 1, 1], [], []>} : vector<8x32xbf16>, vector<32x32xbf16>, vector<8x32xf32> -> vector<8x32xf32>
    %c0_47 = arith.constant 0 : index
    %c0_48 = arith.constant 0 : index
    %c0_49 = arith.constant 0 : index
    %122 = vector.load %arg8[%c0_47, %c0_48, %c0_49] : memref<1x8x32xf32, #tpu.memory_space<vmem>>, vector<1x8x32xf32>
    %123 = vector.shape_cast %122 : vector<1x8x32xf32> to vector<8x32xf32>
    %124 = vector.shape_cast %121 : vector<8x32xf32> to vector<1x8x32xf32>
    tpu.vector_store %arg8[%c0_47, %c0_48, %c0_49], %124 {strides = array<i32>} : memref<1x8x32xf32, #tpu.memory_space<vmem>>, vector<1x8x32xf32>,
    return
  }
  func.func @transform_0(%arg0: i32) -> (i32, i32, i32) {
    %c0_i32 = arith.constant 0 : i32
    %c0_i32_0 = arith.constant 0 : i32
    %c0_i32_1 = arith.constant 0 : i32
    return %arg0, %c0_i32, %c0_i32_0 : i32, i32, i32
  }
  func.func @transform_1(%arg0: i32) -> (i32, i32) {
    %c0_i32 = arith.constant 0 : i32
    %c0_i32_0 = arith.constant 0 : i32
    %c0_i32_1 = arith.constant 0 : i32
    return %c0_i32, %c0_i32_0 : i32, i32
  }
  func.func @transform_2(%arg0: i32) -> (i32, i32) {
    %c0_i32 = arith.constant 0 : i32
    %c0_i32_0 = arith.constant 0 : i32
    %c0_i32_1 = arith.constant 0 : i32
    return %c0_i32, %c0_i32_0 : i32, i32
  }
  func.func @transform_3(%arg0: i32) -> (i32, i32) {
    %c0_i32 = arith.constant 0 : i32
    %c0_i32_0 = arith.constant 0 : i32
    %c0_i32_1 = arith.constant 0 : i32
    return %c0_i32, %c0_i32_0 : i32, i32
  }
  func.func @transform_4(%arg0: i32) -> (i32, i32) {
    %c0_i32 = arith.constant 0 : i32
    %c0_i32_0 = arith.constant 0 : i32
    %c0_i32_1 = arith.constant 0 : i32
    return %c0_i32, %c0_i32_0 : i32, i32
  }
  func.func @transform_5(%arg0: i32) -> (i32, i32) {
    %c0_i32 = arith.constant 0 : i32
    %c0_i32_0 = arith.constant 0 : i32
    %c0_i32_1 = arith.constant 0 : i32
    return %c0_i32, %c0_i32_0 : i32, i32
  }
  func.func @transform_6(%arg0: i32) -> (i32, i32, i32) {
    %c0_i32 = arith.constant 0 : i32
    %c0_i32_0 = arith.constant 0 : i32
    %c0_i32_1 = arith.constant 0 : i32
    return %arg0, %c0_i32, %c0_i32_0 : i32, i32, i32
  }
  func.func @transform_7(%arg0: i32) -> (i32, i32, i32) {
    %c0_i32 = arith.constant 0 : i32
    %c0_i32_0 = arith.constant 0 : i32
    %c0_i32_1 = arith.constant 0 : i32
    return %arg0, %c0_i32, %c0_i32_0 : i32, i32, i32
  }
  func.func @transform_8(%arg0: i32) -> (i32, i32, i32, i32) {
    %c0_i32 = arith.constant 0 : i32
    %c0_i32_0 = arith.constant 0 : i32
    %c0_i32_1 = arith.constant 0 : i32
    %c0_i32_2 = arith.constant 0 : i32
    return %arg0, %c0_i32, %c0_i32_0, %c0_i32_1 : i32, i32, i32, i32
  }
}

</mosaic_0001>

<llo_original>
// kernel: tpu_custom_call.1
$region0: #{tpu_custom_call.1}
  #allocation0 [shape = 'u32[]', space=smem, size = 0x4, offset = 0x4, fixed_abs, tag = 'smem constant byte address 0x4 - core index']
  #allocation1 [shape = 'u32[72,128]{1,0:T(1,128)}', space=vmem, size = 0x9000, scoped, tag = 'internal scratch']
  %s0 = inlined_call_operand.vmem [shape: bf16[2,12,32], index: 0, kind: input, shape index: {}]
  %s1 = inlined_call_operand.vmem [shape: bf16[32,96], index: 1, kind: input, shape index: {}]
  %s2 = inlined_call_operand.vmem [shape: bf16[32,32], index: 2, kind: input, shape index: {}]
  %s3 = inlined_call_operand.vmem [shape: bf16[128,32], index: 3, kind: input, shape index: {}]
  %s4 = inlined_call_operand.vmem [shape: f32[1,32], index: 4, kind: input, shape index: {}]
  %s5 = inlined_call_operand.vmem [shape: f32[1,32], index: 5, kind: input, shape index: {}]
  %s6 = inlined_call_operand.vmem [shape: f32[2,8,12], index: 6, kind: input, shape index: {}]
  %s7 = inlined_call_operand.hbm [shape: f32[2,8,32], index: 7, kind: output, shape index: {0}]
  %s8 = inlined_call_operand.hbm [shape: f32[2,4,8,12], index: 8, kind: output, shape index: {1}]
  %9 = xla_tuple %s7, %s8
  %s10 = sld [smem:[#allocation0]]
  $region69: #{tpu_custom_call.1} parent=0
    _
  %s12 = ssub.s32 1, %s10
  %s13 = scalar_select 0, %s12, %s10
  $region1: #{tpu_custom_call.1} parent=0
    #allocation2 [shape = 'u8[8192]{0}', space=vmem, size = 0x2000, scoped, tag = 'output window, operand 0']
    #allocation3 [shape = 's32[2]{0}', space=sflag, size = 0x8, scoped, tag = 'scoped memory for tpu_custom_call.1']
    #allocation4 [shape = 'u8[32768]{0}', space=vmem, size = 0x8000, scoped, tag = 'output window, operand 1']
    #allocation5 [shape = 's32[2]{0}', space=sflag, size = 0x8, scoped, tag = 'scoped memory for tpu_custom_call.1']
    %14 = vsyncpa [#allocation3], 0
    %s15 = scalar_lea.sflag [#allocation3], 1
    %16 = vsyncpa %s15, 0
    %17 = vsyncpa [#allocation5], 0
    %s18 = scalar_lea.sflag [#allocation5], 1
    %19 = vsyncpa %s18, 0
    loop: start=0, step=1, limit=4
    $region2: #{tpu_custom_call.1} parent=1 // loop_pre_header
      _
    $region3: #{tpu_custom_call.1} parent=1 // loop_header
      %s21 = sphi 0, %s25
      %p22 = scmp.ge.s32.totalorder %s21, 4
      %s31 = sphi 0, %s33
      %s34 = sphi 0, %s31
      %s35 = sphi 0, %s34
      %s51 = sphi 0, %s35
      %s55 = sphi 0, %s55
      %s57 = sphi 0, %s55
      %s58 = sphi 0, %s57
      %s72 = sphi 0, %s58
      %s76 = sphi 0, %s76
      %s78 = sphi 0, %s76
      %s79 = sphi 0, %s78
      %s93 = sphi 0, %s79
      %s97 = sphi 0, %s97
      %s99 = sphi 0, %s97
      %s100 = sphi 0, %s99
      %s114 = sphi 0, %s100
      %s118 = sphi 0, %s118
      %s120 = sphi 0, %s118
      %s121 = sphi 0, %s120
      %s135 = sphi 0, %s121
      %s139 = sphi 0, %s139
      %s141 = sphi 0, %s139
      %s142 = sphi 0, %s141
      %s156 = sphi 0, %s142
      %s162 = sphi 0, %s164
      %s165 = sphi 0, %s162
      %s166 = sphi 0, %s165
      %s182 = sphi 0, %s166
      %s188 = sphi 0, %s190
      %s191 = sphi 0, %s188
      %s192 = sphi 0, %s191
      %s208 = sphi 0, %s192
      %s214 = sphi 0, %s216
      %s217 = sphi 0, %s214
      %s218 = sphi 0, %s217
      %s234 = sphi 0, %s218
    $region4: #{tpu_custom_call.1} parent=1 // loop_header_branch
      %24 = sbr.rel (%p22) target = $region8
    $region5: #{tpu_custom_call.1} parent=1 // loop_body
      %s26 = ssub.s32 %s21, 1
      %s27 = ssub.s32 %s21, 2
      %s28 = sadd.s32 %s21, 1
      %s29 = ssub.s32 %s21, %s28
      %p30 = scmp.eq.s32.totalorder %s29, 0
      %s32 = sadd.s32 %s31, 1
      %s33 = scalar_select %p30, %s31, %s32
      %p36 = pneg %p30
      %p37 = scmp.eq.s32.totalorder %s21, 1
      %p38 = por %p36, %p37
      %p39 = scmp.ne.s32.totalorder %s31, %s34
      %p40 = scmp.eq.s32.totalorder %s21, 0
      %p41 = por %p39, %p40
      %p42 = scmp.ne.s32.totalorder %s31, %s34
      %p43 = scmp.eq.s32.totalorder %s26, 1
      %p44 = por %p42, %p43
      %p45 = scmp.ne.s32.totalorder %s34, %s35
      %p46 = scmp.eq.s32.totalorder %s26, 0
      %p47 = por %p45, %p46
      %p48 = scmp.ne.s32.totalorder %s34, %s35
      %p49 = scmp.eq.s32.totalorder %s27, 1
      %p50 = por %p48, %p49
      %p52 = scmp.ne.s32.totalorder %s35, %s51
      %p53 = scmp.eq.s32.totalorder %s27, 0
      %p54 = por %p52, %p53
      %s56 = sadd.s32 %s55, 1
      %p59 = scmp.eq.s32.totalorder %s21, 1
      %p60 = scmp.ne.s32.totalorder %s55, %s57
      %p61 = scmp.eq.s32.totalorder %s21, 0
      %p62 = por %p60, %p61
      %p63 = scmp.ne.s32.totalorder %s55, %s57
      %p64 = scmp.eq.s32.totalorder %s26, 1
      %p65 = por %p63, %p64
      %p66 = scmp.ne.s32.totalorder %s57, %s58
      %p67 = scmp.eq.s32.totalorder %s26, 0
      %p68 = por %p66, %p67
      %p69 = scmp.ne.s32.totalorder %s57, %s58
      %p70 = scmp.eq.s32.totalorder %s27, 1
      %p71 = por %p69, %p70
      %p73 = scmp.ne.s32.totalorder %s58, %s72
      %p74 = scmp.eq.s32.totalorder %s27, 0
      %p75 = por %p73, %p74
      %s77 = sadd.s32 %s76, 1
      %p80 = scmp.eq.s32.totalorder %s21, 1
      %p81 = scmp.ne.s32.totalorder %s76, %s78
      %p82 = scmp.eq.s32.totalorder %s21, 0
      %p83 = por %p81, %p82
      %p84 = scmp.ne.s32.totalorder %s76, %s78
      %p85 = scmp.eq.s32.totalorder %s26, 1
      %p86 = por %p84, %p85
      %p87 = scmp.ne.s32.totalorder %s78, %s79
      %p88 = scmp.eq.s32.totalorder %s26, 0
      %p89 = por %p87, %p88
      %p90 = scmp.ne.s32.totalorder %s78, %s79
      %p91 = scmp.eq.s32.totalorder %s27, 1
      %p92 = por %p90, %p91
      %p94 = scmp.ne.s32.totalorder %s79, %s93
      %p95 = scmp.eq.s32.totalorder %s27, 0
      %p96 = por %p94, %p95
      %s98 = sadd.s32 %s97, 1
      %p101 = scmp.eq.s32.totalorder %s21, 1
      %p102 = scmp.ne.s32.totalorder %s97, %s99
      %p103 = scmp.eq.s32.totalorder %s21, 0
      %p104 = por %p102, %p103
      %p105 = scmp.ne.s32.totalorder %s97, %s99
      %p106 = scmp.eq.s32.totalorder %s26, 1
      %p107 = por %p105, %p106
      %p108 = scmp.ne.s32.totalorder %s99, %s100
      %p109 = scmp.eq.s32.totalorder %s26, 0
      %p110 = por %p108, %p109
      %p111 = scmp.ne.s32.totalorder %s99, %s100
      %p112 = scmp.eq.s32.totalorder %s27, 1
      %p113 = por %p111, %p112
      %p115 = scmp.ne.s32.totalorder %s100, %s114
      %p116 = scmp.eq.s32.totalorder %s27, 0
      %p117 = por %p115, %p116
      %s119 = sadd.s32 %s118, 1
      %p122 = scmp.eq.s32.totalorder %s21, 1
      %p123 = scmp.ne.s32.totalorder %s118, %s120
      %p124 = scmp.eq.s32.totalorder %s21, 0
      %p125 = por %p123, %p124
      %p126 = scmp.ne.s32.totalorder %s118, %s120
      %p127 = scmp.eq.s32.totalorder %s26, 1
      %p128 = por %p126, %p127
      %p129 = scmp.ne.s32.totalorder %s120, %s121
      %p130 = scmp.eq.s32.totalorder %s26, 0
      %p131 = por %p129, %p130
      %p132 = scmp.ne.s32.totalorder %s120, %s121
      %p133 = scmp.eq.s32.totalorder %s27, 1
      %p134 = por %p132, %p133
      %p136 = scmp.ne.s32.totalorder %s121, %s135
      %p137 = scmp.eq.s32.totalorder %s27, 0
      %p138 = por %p136, %p137
      %s140 = sadd.s32 %s139, 1
      %p143 = scmp.eq.s32.totalorder %s21, 1
      %p144 = scmp.ne.s32.totalorder %s139, %s141
      %p145 = scmp.eq.s32.totalorder %s21, 0
      %p146 = por %p144, %p145
      %p147 = scmp.ne.s32.totalorder %s139, %s141
      %p148 = scmp.eq.s32.totalorder %s26, 1
      %p149 = por %p147, %p148
      %p150 = scmp.ne.s32.totalorder %s141, %s142
      %p151 = scmp.eq.s32.totalorder %s26, 0
      %p152 = por %p150, %p151
      %p153 = scmp.ne.s32.totalorder %s141, %s142
      %p154 = scmp.eq.s32.totalorder %s27, 1
      %p155 = por %p153, %p154
      %p157 = scmp.ne.s32.totalorder %s142, %s156
      %p158 = scmp.eq.s32.totalorder %s27, 0
      %p159 = por %p157, %p158
      %s160 = ssub.s32 %s21, %s28
      %p161 = scmp.eq.s32.totalorder %s160, 0
      %s163 = sadd.s32 %s162, 1
      %s164 = scalar_select %p161, %s162, %s163
      %p167 = pneg %p161
      %p168 = scmp.eq.s32.totalorder %s21, 1
      %p169 = por %p167, %p168
      %p170 = scmp.ne.s32.totalorder %s162, %s165
      %p171 = scmp.eq.s32.totalorder %s21, 0
      %p172 = por %p170, %p171
      %p173 = scmp.ne.s32.totalorder %s162, %s165
      %p174 = scmp.eq.s32.totalorder %s26, 1
      %p175 = por %p173, %p174
      %p176 = scmp.ne.s32.totalorder %s165, %s166
      %p177 = scmp.eq.s32.totalorder %s26, 0
      %p178 = por %p176, %p177
      %p179 = scmp.ne.s32.totalorder %s165, %s166
      %p180 = scmp.eq.s32.totalorder %s27, 1
      %p181 = por %p179, %p180
      %p183 = scmp.ne.s32.totalorder %s166, %s182
      %p184 = scmp.eq.s32.totalorder %s27, 0
      %p185 = por %p183, %p184
      %s186 = ssub.s32 %s21, %s28
      %p187 = scmp.eq.s32.totalorder %s186, 0
      %s189 = sadd.s32 %s188, 1
      %s190 = scalar_select %p187, %s188, %s189
      %p193 = pneg %p187
      %p194 = scmp.eq.s32.totalorder %s21, 1
      %p195 = por %p193, %p194
      %p196 = scmp.ne.s32.totalorder %s188, %s191
      %p197 = scmp.eq.s32.totalorder %s21, 0
      %p198 = por %p196, %p197
      %p199 = scmp.ne.s32.totalorder %s188, %s191
      %p200 = scmp.eq.s32.totalorder %s26, 1
      %p201 = por %p199, %p200
      %p202 = scmp.ne.s32.totalorder %s191, %s192
      %p203 = scmp.eq.s32.totalorder %s26, 0
      %p204 = por %p202, %p203
      %p205 = scmp.ne.s32.totalorder %s191, %s192
      %p206 = scmp.eq.s32.totalorder %s27, 1
      %p207 = por %p205, %p206
      %p209 = scmp.ne.s32.totalorder %s192, %s208
      %p210 = scmp.eq.s32.totalorder %s27, 0
      %p211 = por %p209, %p210
      %s212 = ssub.s32 %s21, %s28
      %p213 = scmp.eq.s32.totalorder %s212, 0
      %s215 = sadd.s32 %s214, 1
      %s216 = scalar_select %p213, %s214, %s215
      %p219 = pneg %p213
      %p220 = scmp.eq.s32.totalorder %s21, 1
      %p221 = por %p219, %p220
      %p222 = scmp.ne.s32.totalorder %s214, %s217
      %p223 = scmp.eq.s32.totalorder %s21, 0
      %p224 = por %p222, %p223
      %p225 = scmp.ne.s32.totalorder %s214, %s217
      %p226 = scmp.eq.s32.totalorder %s26, 1
      %p227 = por %p225, %p226
      %p228 = scmp.ne.s32.totalorder %s217, %s218
      %p229 = scmp.eq.s32.totalorder %s26, 0
      %p230 = por %p228, %p229
      %p231 = scmp.ne.s32.totalorder %s217, %s218
      %p232 = scmp.eq.s32.totalorder %s27, 1
      %p233 = por %p231, %p232
      %p235 = scmp.ne.s32.totalorder %s218, %s234
      %p236 = scmp.eq.s32.totalorder %s27, 0
      %p237 = por %p235, %p236
      %p238 = scmp.le.s32.totalorder 1, %s21
      %p239 = scmp.lt.s32.totalorder %s21, 3
      %p240 = pnand %p238, %p239
      %p241 = pneg %p240
      // Predicated region
      $region9: #{tpu_custom_call.1} parent=5 // pred_check
        _
      $region10: #{tpu_custom_call.1} parent=5 // pred_check_branch
        %243 = sbr.rel (%p240) target = $region12
      $region11: #{tpu_custom_call.1} parent=5 // pred_region
        %s244 = ssub.s32 %s21, 1
        // Predicated region
        $region13: #{tpu_custom_call.1} parent=11 // pred_check
          %p245 = pneg %p68
        $region14: #{tpu_custom_call.1} parent=11 // pred_check_branch
          %247 = sbr.rel (%p245) target = $region16
        $region15: #{tpu_custom_call.1} parent=11 // pred_region
          _
        $region16: #{tpu_custom_call.1} parent=11 // pred_fallthru
          _
        // Predicated region
        $region17: #{tpu_custom_call.1} parent=11 // pred_check
          %p248 = pneg %p89
        $region18: #{tpu_custom_call.1} parent=11 // pred_check_branch
          %250 = sbr.rel (%p248) target = $region20
        $region19: #{tpu_custom_call.1} parent=11 // pred_region
          _
        $region20: #{tpu_custom_call.1} parent=11 // pred_fallthru
          _
        // Predicated region
        $region21: #{tpu_custom_call.1} parent=11 // pred_check
          %p251 = pneg %p110
        $region22: #{tpu_custom_call.1} parent=11 // pred_check_branch
          %253 = sbr.rel (%p251) target = $region24
        $region23: #{tpu_custom_call.1} parent=11 // pred_region
          _
        $region24: #{tpu_custom_call.1} parent=11 // pred_fallthru
          _
        // Predicated region
        $region25: #{tpu_custom_call.1} parent=11 // pred_check
          %p254 = pneg %p131
        $region26: #{tpu_custom_call.1} parent=11 // pred_check_branch
          %256 = sbr.rel (%p254) target = $region28
        $region27: #{tpu_custom_call.1} parent=11 // pred_region
          _
        $region28: #{tpu_custom_call.1} parent=11 // pred_fallthru
          _
        // Predicated region
        $region29: #{tpu_custom_call.1} parent=11 // pred_check
          %p257 = pneg %p152
        $region30: #{tpu_custom_call.1} parent=11 // pred_check_branch
          %259 = sbr.rel (%p257) target = $region32
        $region31: #{tpu_custom_call.1} parent=11 // pred_region
          _
        $region32: #{tpu_custom_call.1} parent=11 // pred_fallthru
          _
      $region12: #{tpu_custom_call.1} parent=5 // pred_fallthru
        _
      %p260 = scmp.lt.s32.totalorder %s21, 2
      // Predicated region
      $region33: #{tpu_custom_call.1} parent=5 // pred_check
        %p261 = pneg %p260
      $region34: #{tpu_custom_call.1} parent=5 // pred_check_branch
        %263 = sbr.rel (%p261) target = $region36
      $region35: #{tpu_custom_call.1} parent=5 // pred_region
        // Predicated region
        $region37: #{tpu_custom_call.1} parent=35 // pred_check
          %p264 = pneg %p41
        $region38: #{tpu_custom_call.1} parent=35 // pred_check_branch
          %266 = sbr.rel (%p264) target = $region40
        $region39: #{tpu_custom_call.1} parent=35 // pred_region
          %p267 = scmp.lt.s32.totalorder %s21, 1
          %s268 = scalar_select %p267, %s21, 1
          %s269 = smul.addr %s268, 2
          %s270 = smul.addr %s269, 4
          %s271 = scalar_lea.vmem %s0, %s270
        $region40: #{tpu_custom_call.1} parent=35 // pred_fallthru
          _
        // Predicated region
        $region41: #{tpu_custom_call.1} parent=35 // pred_check
          %p272 = pneg %p172
        $region42: #{tpu_custom_call.1} parent=35 // pred_check_branch
          %274 = sbr.rel (%p272) target = $region44
        $region43: #{tpu_custom_call.1} parent=35 // pred_region
          %p275 = scmp.lt.s32.totalorder %s21, 1
          %s276 = scalar_select %p275, %s21, 1
          %s277 = smul.addr %s276, 8
          %s278 = scalar_lea.vmem %s6, %s277
        $region44: #{tpu_custom_call.1} parent=35 // pred_fallthru
          _
      $region36: #{tpu_custom_call.1} parent=5 // pred_fallthru
        _
      %p279 = scmp.le.s32.totalorder 1, %s21
      %p280 = scmp.lt.s32.totalorder %s21, 3
      %p281 = pnand %p279, %p280
      %p282 = pneg %p281
      // Predicated region
      $region45: #{tpu_custom_call.1} parent=5 // pred_check
        _
      $region46: #{tpu_custom_call.1} parent=5 // pred_check_branch
        %284 = sbr.rel (%p281) target = $region48
      $region47: #{tpu_custom_call.1} parent=5 // pred_region
        %s285 = ssub.s32 %s21, 1
        %p286 = scmp.lt.s32.totalorder %s26, 1
        %s287 = scalar_select %p286, %s26, 1
        %s288 = smul.addr %s287, 2
        %s289 = smul.addr %s288, 4
        %s290 = scalar_lea.vmem %s0, %s289
        %p291 = pneg %p47
        %p292 = pneg %p44
        %p293 = pneg %p68
        %p294 = pneg %p65
        %p295 = pneg %p89
        %p296 = pneg %p86
        %p297 = pneg %p110
        %p298 = pneg %p107
        %p299 = pneg %p131
        %p300 = pneg %p128
        %p301 = pneg %p152
        %p302 = pneg %p149
        %p303 = scmp.lt.s32.totalorder %s26, 1
        %s304 = scalar_select %p303, %s26, 1
        %s305 = smul.addr %s304, 8
        %s306 = scalar_lea.vmem %s6, %s305
        %p307 = pneg %p178
        %p308 = pneg %p175
        %p309 = pneg %p204
        %p310 = pneg %p201
        %s311 = sand.u32 %s191, 1
        %s312 = scalar_lea.sflag [#allocation3], %s311
        %s313 = sand.u32 %s191, 1
        %s314 = smul.addr %s313, 8
        %s315 = scalar_lea.vmem [#allocation2], %s314
        %p316 = pneg %p230
        %p317 = pneg %p227
        %s318 = sand.u32 %s217, 1
        %s319 = scalar_lea.sflag [#allocation5], %s318
        %s320 = sand.u32 %s217, 1
        %s321 = smul.addr %s320, 32
        %s322 = scalar_lea.vmem [#allocation4], %s321
        %p323 = scmp.lt.s32.totalorder %s26, 1
        %s324 = scalar_select %p323, %s26, 1
        %s325 = smul.addr %s324, 2
        %s326 = smul.addr %s325, 4
        %s327 = scalar_lea.vmem %s0, %s326
        %p328 = scmp.lt.s32.totalorder %s26, 1
        %s329 = scalar_select %p328, %s26, 1
        %s330 = smul.addr %s329, 8
        %s331 = scalar_lea.vmem %s6, %s330
        %v333 = vld [vmem:[%s327] sm:$0xf]
        %v334 = vld [vmem:[%s327 + $0x4] sm:$0x3]
        %v335 = vld [vmem:[%s1] sm:$0xf]
        %v336 = vld [vmem:[%s1 + $0x4] sm:$0xf]
        %v337 = vld [vmem:[%s1 + $0x8] sm:$0xf]
        %v338 = vld [vmem:[%s1 + $0xc] sm:$0xf]
        %v341 = vunpack.c.l.b16 %v333
        %v342 = vunpack.c.l.b16 %v334
        %v343 = vpack.c.b16 %v342, %v341
        %v348 = vunpack.c.l.b16 %v335
        %v349 = vunpack.c.l.b16 %v336
        %v350 = vunpack.c.l.b16 %v337
        %v351 = vunpack.c.l.b16 %v338
        %v352 = vpack.c.b16 %v349, %v348
        %v353 = vpack.c.b16 %v351, %v350
        %vm356 = vcmask 261120
        %v358 = vsel %vm356, %v343, 0
        %360 = vmatpush.bf16.msra.mxu0 0
        %361 = vmatpush.bf16.msra.mxu0 0
        %362 = vmatpush.bf16.msra.mxu0 0
        %363 = vmatpush.bf16.msra.mxu0 0
        %364 = vmatpush.bf16.msra.mxu0 0
        %365 = vmatpush.bf16.msra.mxu0 0
        %366 = vmatpush.bf16.msra.mxu0 %v353
        %367 = vmatpush.bf16.msra.mxu0 %v352
        %368 = vmatmul.bf16.gmra.mxu0 %v358
        %v369 = vpop.f32.mrf.mxu0
        %v370 = vadd.f32 0.0, %v369
        %v371 = vpop.f32.mrf.mxu0
        %v372 = vadd.f32 0.0, %v371
        %373 = vdwg.mxu0
        %v374 = vld [vmem:[%s4] sm:$0x1]
        %v376 = vperm.slane %v374, 0
        %377 = vrot.lane.b32.xlu0 %v376, 64
        %v378 = vpop.permute.xlu0 %377
        %v380 = vadd.f32 %v370, %v378
        %v381 = vadd.f32 %v372, %v378
        %v382 = vmul.f32 %v380, 0.35355338
        %v383 = vmul.f32 %v381, 0.35355338
        %v384 = vpack.c.bf16 %v382, %v382
        %v385 = vpack.c.bf16 %v383, %v383
        %v386 = vld [vmem:[%s5] sm:$0x1]
        %v388 = vperm.slane %v386, 0
        %389 = vrot.lane.b32.xlu0 %v388, 64
        %v390 = vpop.permute.xlu0 %389
        %v392 = vadd.f32 %v370, %v390
        %v393 = vadd.f32 %v372, %v390
        %v394 = vmul.f32 %v392, 0.35355338
        %v395 = vmul.f32 %v393, 0.35355338
        %v396 = vpack.c.bf16 %v394, %v394
        %v397 = vpack.c.bf16 %v395, %v395
        %v398 = vpack.c.bf16 %v370, %v370
        %v399 = vpack.c.bf16 %v372, %v372
        %v400 = vld [vmem:[%s3] sm:$0xf]
        %v401 = vld [vmem:[%s3 + $0x4] sm:$0xf]
        %v402 = vld [vmem:[%s3 + $0x8] sm:$0xf]
        %v403 = vld [vmem:[%s3 + $0xc] sm:$0xf]
        %v404 = vld [vmem:[%s3 + $0x10] sm:$0xf]
        %v405 = vld [vmem:[%s3 + $0x14] sm:$0xf]
        %v406 = vld [vmem:[%s3 + $0x18] sm:$0xf]
        %v407 = vld [vmem:[%s3 + $0x1c] sm:$0xf]
        %v408 = vld [vmem:[%s3 + $0x20] sm:$0xf]
        %v409 = vld [vmem:[%s3 + $0x24] sm:$0xf]
        %v410 = vld [vmem:[%s3 + $0x28] sm:$0xf]
        %v411 = vld [vmem:[%s3 + $0x2c] sm:$0xf]
        %v412 = vld [vmem:[%s3 + $0x30] sm:$0xf]
        %v413 = vld [vmem:[%s3 + $0x34] sm:$0xf]
        %v414 = vld [vmem:[%s3 + $0x38] sm:$0xf]
        %v415 = vld [vmem:[%s3 + $0x3c] sm:$0xf]
        %v416 = vld [vmem:[%s331] sm:$0xff]
        %v419 = vunpack.c.l.b16 %v384
        %v420 = vunpack.c.l.b16 %v385
        %v421 = vpack.c.b16 %v420, %v419
        %v422 = vrot.slane %v421, 2
        %423 = vrot.lane.b32.xlu0 %v422, 64
        %v424 = vpop.permute.xlu0 %423
        %v427 = vunpack.c.l.b16 %v398
        %v428 = vunpack.c.l.b16 %v399
        %v429 = vpack.c.b16 %v428, %v427
        %vm430 = vcmask 64512
        %v432 = vsel %vm430, %v424, 0
        %v435 = vsel %vm430, %v429, 0
        %437 = vmatpush.bf16.xpose.msra.mxu0 0
        %438 = vmatpush.bf16.xpose.msra.mxu0 0
        %439 = vmatpush.bf16.xpose.msra.mxu0 0
        %440 = vmatpush.bf16.xpose.msra.mxu0 0
        %441 = vmatpush.bf16.xpose.msra.mxu0 0
        %442 = vmatpush.bf16.xpose.msra.mxu0 0
        %443 = vmatpush.bf16.xpose.msra.mxu0 0
        %444 = vmatpush.bf16.xpose.msra.mxu0 %v435
        %445 = vmatmul.bf16.gmra.mxu0 %v432
        %v446 = vpop.f32.mrf.mxu0
        %v447 = vadd.f32 0.0, %v446
        %v448 = vpop.f32.mrf.mxu0
        %449 = vdwg.mxu0
        %v452 = vunpack.c.l.b16 %v396
        %v453 = vunpack.c.l.b16 %v397
        %v454 = vpack.c.b16 %v453, %v452
        %v455 = vrot.slane %v454, 2
        %456 = vrot.lane.b32.xlu0 %v455, 64
        %v457 = vpop.permute.xlu0 %456
        %v474 = vunpack.c.l.b16 %v400
        %v475 = vunpack.c.l.b16 %v401
        %v476 = vunpack.c.l.b16 %v402
        %v477 = vunpack.c.l.b16 %v403
        %v478 = vunpack.c.l.b16 %v404
        %v479 = vunpack.c.l.b16 %v405
        %v480 = vunpack.c.l.b16 %v406
        %v481 = vunpack.c.l.b16 %v407
        %v482 = vunpack.c.l.b16 %v408
        %v483 = vunpack.c.l.b16 %v409
        %v484 = vunpack.c.l.b16 %v410
        %v485 = vunpack.c.l.b16 %v411
        %v486 = vunpack.c.l.b16 %v412
        %v487 = vunpack.c.l.b16 %v413
        %v488 = vunpack.c.l.b16 %v414
        %v489 = vunpack.c.l.b16 %v415
        %v490 = vpack.c.b16 %v475, %v474
        %v491 = vpack.c.b16 %v477, %v476
        %v492 = vpack.c.b16 %v479, %v478
        %v493 = vpack.c.b16 %v481, %v480
        %v494 = vpack.c.b16 %v483, %v482
        %v495 = vpack.c.b16 %v485, %v484
        %v496 = vpack.c.b16 %v487, %v486
        %v497 = vpack.c.b16 %v489, %v488
        %v499 = vsel %vm430, %v457, 0
        %v502 = vsel %vm430, %v490, 0
        %v505 = vsel %vm430, %v491, 0
        %v508 = vsel %vm430, %v492, 0
        %v511 = vsel %vm430, %v493, 0
        %v514 = vsel %vm430, %v494, 0
        %v517 = vsel %vm430, %v495, 0
        %v520 = vsel %vm430, %v496, 0
        %v523 = vsel %vm430, %v497, 0
        %525 = vmatpush.bf16.xpose.msra.mxu0 %v523
        %526 = vmatpush.bf16.xpose.msra.mxu0 %v520
        %527 = vmatpush.bf16.xpose.msra.mxu0 %v517
        %528 = vmatpush.bf16.xpose.msra.mxu0 %v514
        %529 = vmatpush.bf16.xpose.msra.mxu0 %v511
        %530 = vmatpush.bf16.xpose.msra.mxu0 %v508
        %531 = vmatpush.bf16.xpose.msra.mxu0 %v505
        %532 = vmatpush.bf16.xpose.msra.mxu0 %v502
        %533 = vmatmul.bf16.gmra.mxu0 %v499
        %v534 = vpop.f32.mrf.mxu0
        %v535 = vadd.f32 0.0, %v534
        %v536 = vpop.f32.mrf.mxu0
        %537 = vdwg.mxu0
        %538 = vrot.lane.b32.xlu0 %v422, 56
        %v539 = vpop.permute.xlu0 %538
        %540 = vrot.lane.b32.xlu0 %v429, 120
        %v541 = vpop.permute.xlu0 %540
        %v543 = vsel %vm430, %v539, 0
        %v546 = vsel %vm430, %v541, 0
        %548 = vmatpush.bf16.xpose.msra.mxu0 0
        %549 = vmatpush.bf16.xpose.msra.mxu0 0
        %550 = vmatpush.bf16.xpose.msra.mxu0 0
        %551 = vmatpush.bf16.xpose.msra.mxu0 0
        %552 = vmatpush.bf16.xpose.msra.mxu0 0
        %553 = vmatpush.bf16.xpose.msra.mxu0 0
        %554 = vmatpush.bf16.xpose.msra.mxu0 0
        %555 = vmatpush.bf16.xpose.msra.mxu0 %v546
        %556 = vmatmul.bf16.gmra.mxu0 %v543
        %v557 = vpop.f32.mrf.mxu0
        %v558 = vadd.f32 0.0, %v557
        %v559 = vpop.f32.mrf.mxu0
        %560 = vdwg.mxu0
        %561 = vrot.lane.b32.xlu0 %v455, 56
        %v562 = vpop.permute.xlu0 %561
        %563 = vrot.lane.b32.xlu0 %v490, 120
        %v564 = vpop.permute.xlu0 %563
        %565 = vrot.lane.b32.xlu0 %v491, 120
        %v566 = vpop.permute.xlu0 %565
        %567 = vrot.lane.b32.xlu0 %v492, 120
        %v568 = vpop.permute.xlu0 %567
        %569 = vrot.lane.b32.xlu0 %v493, 120
        %v570 = vpop.permute.xlu0 %569
        %571 = vrot.lane.b32.xlu0 %v494, 120
        %v572 = vpop.permute.xlu0 %571
        %573 = vrot.lane.b32.xlu0 %v495, 120
        %v574 = vpop.permute.xlu0 %573
        %575 = vrot.lane.b32.xlu0 %v496, 120
        %v576 = vpop.permute.xlu0 %575
        %577 = vrot.lane.b32.xlu0 %v497, 120
        %v578 = vpop.permute.xlu0 %577
        %v580 = vsel %vm430, %v562, 0
        %v583 = vsel %vm430, %v564, 0
        %v586 = vsel %vm430, %v566, 0
        %v589 = vsel %vm430, %v568, 0
        %v592 = vsel %vm430, %v570, 0
        %v595 = vsel %vm430, %v572, 0
        %v598 = vsel %vm430, %v574, 0
        %v601 = vsel %vm430, %v576, 0
        %v604 = vsel %vm430, %v578, 0
        %606 = vmatpush.bf16.xpose.msra.mxu0 %v604
        %607 = vmatpush.bf16.xpose.msra.mxu0 %v601
        %608 = vmatpush.bf16.xpose.msra.mxu0 %v598
        %609 = vmatpush.bf16.xpose.msra.mxu0 %v595
        %610 = vmatpush.bf16.xpose.msra.mxu0 %v592
        %611 = vmatpush.bf16.xpose.msra.mxu0 %v589
        %612 = vmatpush.bf16.xpose.msra.mxu0 %v586
        %613 = vmatpush.bf16.xpose.msra.mxu0 %v583
        %614 = vmatmul.bf16.gmra.mxu0 %v580
        %v615 = vpop.f32.mrf.mxu0
        %v616 = vadd.f32 0.0, %v615
        %v617 = vpop.f32.mrf.mxu0
        %618 = vdwg.mxu0
        %619 = vrot.lane.b32.xlu0 %v422, 48
        %v620 = vpop.permute.xlu0 %619
        %621 = vrot.lane.b32.xlu0 %v429, 112
        %v622 = vpop.permute.xlu0 %621
        %v624 = vsel %vm430, %v620, 0
        %v627 = vsel %vm430, %v622, 0
        %629 = vmatpush.bf16.xpose.msra.mxu0 0
        %630 = vmatpush.bf16.xpose.msra.mxu0 0
        %631 = vmatpush.bf16.xpose.msra.mxu0 0
        %632 = vmatpush.bf16.xpose.msra.mxu0 0
        %633 = vmatpush.bf16.xpose.msra.mxu0 0
        %634 = vmatpush.bf16.xpose.msra.mxu0 0
        %635 = vmatpush.bf16.xpose.msra.mxu0 0
        %636 = vmatpush.bf16.xpose.msra.mxu0 %v627
        %637 = vmatmul.bf16.gmra.mxu0 %v624
        %v638 = vpop.f32.mrf.mxu0
        %v639 = vadd.f32 0.0, %v638
        %v640 = vpop.f32.mrf.mxu0
        %641 = vdwg.mxu0
        %642 = vrot.lane.b32.xlu0 %v455, 48
        %v643 = vpop.permute.xlu0 %642
        %644 = vrot.lane.b32.xlu0 %v490, 112
        %v645 = vpop.permute.xlu0 %644
        %646 = vrot.lane.b32.xlu0 %v491, 112
        %v647 = vpop.permute.xlu0 %646
        %648 = vrot.lane.b32.xlu0 %v492, 112
        %v649 = vpop.permute.xlu0 %648
        %650 = vrot.lane.b32.xlu0 %v493, 112
        %v651 = vpop.permute.xlu0 %650
        %652 = vrot.lane.b32.xlu0 %v494, 112
        %v653 = vpop.permute.xlu0 %652
        %654 = vrot.lane.b32.xlu0 %v495, 112
        %v655 = vpop.permute.xlu0 %654
        %656 = vrot.lane.b32.xlu0 %v496, 112
        %v657 = vpop.permute.xlu0 %656
        %658 = vrot.lane.b32.xlu0 %v497, 112
        %v659 = vpop.permute.xlu0 %658
        %v661 = vsel %vm430, %v643, 0
        %v664 = vsel %vm430, %v645, 0
        %v667 = vsel %vm430, %v647, 0
        %v670 = vsel %vm430, %v649, 0
        %v673 = vsel %vm430, %v651, 0
        %v676 = vsel %vm430, %v653, 0
        %v679 = vsel %vm430, %v655, 0
        %v682 = vsel %vm430, %v657, 0
        %v685 = vsel %vm430, %v659, 0
        %687 = vmatpush.bf16.xpose.msra.mxu0 %v685
        %688 = vmatpush.bf16.xpose.msra.mxu0 %v682
        %689 = vmatpush.bf16.xpose.msra.mxu0 %v679
        %690 = vmatpush.bf16.xpose.msra.mxu0 %v676
        %691 = vmatpush.bf16.xpose.msra.mxu0 %v673
        %692 = vmatpush.bf16.xpose.msra.mxu0 %v670
        %693 = vmatpush.bf16.xpose.msra.mxu0 %v667
        %694 = vmatpush.bf16.xpose.msra.mxu0 %v664
        %695 = vmatmul.bf16.gmra.mxu0 %v661
        %v696 = vpop.f32.mrf.mxu0
        %v697 = vadd.f32 0.0, %v696
        %v698 = vpop.f32.mrf.mxu0
        %699 = vdwg.mxu0
        %700 = vrot.lane.b32.xlu0 %v422, 40
        %v701 = vpop.permute.xlu0 %700
        %702 = vrot.lane.b32.xlu0 %v429, 104
        %v703 = vpop.permute.xlu0 %702
        %v705 = vsel %vm430, %v701, 0
        %v708 = vsel %vm430, %v703, 0
        %710 = vmatpush.bf16.xpose.msra.mxu0 0
        %711 = vmatpush.bf16.xpose.msra.mxu0 0
        %712 = vmatpush.bf16.xpose.msra.mxu0 0
        %713 = vmatpush.bf16.xpose.msra.mxu0 0
        %714 = vmatpush.bf16.xpose.msra.mxu0 0
        %715 = vmatpush.bf16.xpose.msra.mxu0 0
        %716 = vmatpush.bf16.xpose.msra.mxu0 0
        %717 = vmatpush.bf16.xpose.msra.mxu0 %v708
        %718 = vmatmul.bf16.gmra.mxu0 %v705
        %v719 = vpop.f32.mrf.mxu0
        %v720 = vadd.f32 0.0, %v719
        %v721 = vpop.f32.mrf.mxu0
        %722 = vdwg.mxu0
        %723 = vrot.lane.b32.xlu0 %v455, 40
        %v724 = vpop.permute.xlu0 %723
        %725 = vrot.lane.b32.xlu0 %v490, 104
        %v726 = vpop.permute.xlu0 %725
        %727 = vrot.lane.b32.xlu0 %v491, 104
        %v728 = vpop.permute.xlu0 %727
        %729 = vrot.lane.b32.xlu0 %v492, 104
        %v730 = vpop.permute.xlu0 %729
        %731 = vrot.lane.b32.xlu0 %v493, 104
        %v732 = vpop.permute.xlu0 %731
        %733 = vrot.lane.b32.xlu0 %v494, 104
        %v734 = vpop.permute.xlu0 %733
        %735 = vrot.lane.b32.xlu0 %v495, 104
        %v736 = vpop.permute.xlu0 %735
        %737 = vrot.lane.b32.xlu0 %v496, 104
        %v738 = vpop.permute.xlu0 %737
        %739 = vrot.lane.b32.xlu0 %v497, 104
        %v740 = vpop.permute.xlu0 %739
        %v742 = vsel %vm430, %v724, 0
        %v745 = vsel %vm430, %v726, 0
        %v748 = vsel %vm430, %v728, 0
        %v751 = vsel %vm430, %v730, 0
        %v754 = vsel %vm430, %v732, 0
        %v757 = vsel %vm430, %v734, 0
        %v760 = vsel %vm430, %v736, 0
        %v763 = vsel %vm430, %v738, 0
        %v766 = vsel %vm430, %v740, 0
        %768 = vmatpush.bf16.xpose.msra.mxu0 %v766
        %769 = vmatpush.bf16.xpose.msra.mxu0 %v763
        %770 = vmatpush.bf16.xpose.msra.mxu0 %v760
        %771 = vmatpush.bf16.xpose.msra.mxu0 %v757
        %772 = vmatpush.bf16.xpose.msra.mxu0 %v754
        %773 = vmatpush.bf16.xpose.msra.mxu0 %v751
        %774 = vmatpush.bf16.xpose.msra.mxu0 %v748
        %775 = vmatpush.bf16.xpose.msra.mxu0 %v745
        %776 = vmatmul.bf16.gmra.mxu0 %v742
        %v777 = vpop.f32.mrf.mxu0
        %v778 = vadd.f32 0.0, %v777
        %v779 = vpop.f32.mrf.mxu0
        %780 = vdwg.mxu0
        %v781 = vlaneseq
        %v782 = vshrl.u32 %v781, 7
        %v783 = vand.u32 %v782, 1
        %vm784 = vcmp.ne.s32.totalorder %v783, 0
        %789 = vrot.lane.b32.xlu0 %v535, 1
        %v790 = vpop.permute.xlu0 %789
        %791 = vrot.lane.b32.xlu0 %v616, 1
        %v792 = vpop.permute.xlu0 %791
        %793 = vrot.lane.b32.xlu0 %v697, 1
        %v794 = vpop.permute.xlu0 %793
        %795 = vrot.lane.b32.xlu0 %v778, 1
        %v796 = vpop.permute.xlu0 %795
        %v801 = vsel %vm784, %v790, %v535
        %v802 = vsel %vm784, %v792, %v616
        %v803 = vsel %vm784, %v794, %v697
        %v804 = vsel %vm784, %v796, %v778
        %v805 = vand.u32 %v782, 2
        %vm806 = vcmp.ne.s32.totalorder %v805, 0
        %811 = vrot.lane.b32.xlu0 %v801, 2
        %v812 = vpop.permute.xlu0 %811
        %813 = vrot.lane.b32.xlu0 %v802, 2
        %v814 = vpop.permute.xlu0 %813
        %815 = vrot.lane.b32.xlu0 %v803, 2
        %v816 = vpop.permute.xlu0 %815
        %817 = vrot.lane.b32.xlu0 %v804, 2
        %v818 = vpop.permute.xlu0 %817
        %v823 = vsel %vm806, %v812, %v801
        %v824 = vsel %vm806, %v814, %v802
        %v825 = vsel %vm806, %v816, %v803
        %v826 = vsel %vm806, %v818, %v804
        %v827 = vand.u32 %v782, 4
        %vm828 = vcmp.ne.s32.totalorder %v827, 0
        %833 = vrot.lane.b32.xlu0 %v823, 4
        %v834 = vpop.permute.xlu0 %833
        %835 = vrot.lane.b32.xlu0 %v824, 4
        %v836 = vpop.permute.xlu0 %835
        %837 = vrot.lane.b32.xlu0 %v825, 4
        %v838 = vpop.permute.xlu0 %837
        %839 = vrot.lane.b32.xlu0 %v826, 4
        %v840 = vpop.permute.xlu0 %839
        %v845 = vsel %vm828, %v834, %v823
        %v846 = vsel %vm828, %v836, %v824
        %v847 = vsel %vm828, %v838, %v825
        %v848 = vsel %vm828, %v840, %v826
        %853 = vrot.lane.b32.xlu0 %v845, 121
        %v854 = vpop.permute.xlu0 %853
        %855 = vrot.lane.b32.xlu0 %v846, 121
        %v856 = vpop.permute.xlu0 %855
        %857 = vrot.lane.b32.xlu0 %v847, 121
        %v858 = vpop.permute.xlu0 %857
        %859 = vrot.lane.b32.xlu0 %v848, 121
        %v860 = vpop.permute.xlu0 %859
        %v865 = vadd.f32 %v447, %v854
        %v866 = vadd.f32 %v558, %v856
        %v867 = vadd.f32 %v639, %v858
        %v868 = vadd.f32 %v720, %v860
        %v869 = vadd.f32 %v865, %v416
        %v870 = vadd.f32 %v866, %v416
        %v871 = vadd.f32 %v867, %v416
        %v872 = vadd.f32 %v868, %v416
        %vm873 = vcmask 97280
        %v874 = vsel %vm873, %v869, -inf
        %875 = vmax.xlane.f32.xlu0 %v874
        %v876 = vpop.xlane.xlu0 %875
        %v877 = vsel %vm873, %v870, -inf
        %878 = vmax.xlane.f32.xlu0 %v877
        %v879 = vpop.xlane.xlu0 %878
        %v880 = vsel %vm873, %v871, -inf
        %881 = vmax.xlane.f32.xlu0 %v880
        %v882 = vpop.xlane.xlu0 %881
        %v883 = vsel %vm873, %v872, -inf
        %884 = vmax.xlane.f32.xlu0 %v883
        %v885 = vpop.xlane.xlu0 %884
        %v886 = vsub.f32 %v869, %v876
        %v887 = vsub.f32 %v870, %v879
        %v888 = vsub.f32 %v871, %v882
        %v889 = vsub.f32 %v872, %v885
        %v890 = vmul.f32 %v886, 1.442695
        %v891 = vpow.pop %v890
        %v892 = vmul.f32 %v887, 1.442695
        %v893 = vpow.pop %v892
        %v894 = vmul.f32 %v888, 1.442695
        %v895 = vpow.pop %v894
        %v896 = vmul.f32 %v889, 1.442695
        %v897 = vpow.pop %v896
        %v898 = vsel %vm873, %v891, 0.0
        %899 = vadd.xlane.f32.xlu0 %v898
        %v900 = vpop.xlane.xlu0 %899
        %v901 = vsel %vm873, %v893, 0.0
        %902 = vadd.xlane.f32.xlu0 %v901
        %v903 = vpop.xlane.xlu0 %902
        %v904 = vsel %vm873, %v895, 0.0
        %905 = vadd.xlane.f32.xlu0 %v904
        %v906 = vpop.xlane.xlu0 %905
        %v907 = vsel %vm873, %v897, 0.0
        %908 = vadd.xlane.f32.xlu0 %v907
        %v909 = vpop.xlane.xlu0 %908
        %v910 = vrcp.pop %v900
        %v911 = vrcp.pop %v903
        %v912 = vrcp.pop %v906
        %v913 = vrcp.pop %v909
        %v914 = vmul.f32 %v891, %v910
        %v915 = vmul.f32 %v893, %v911
        %v916 = vmul.f32 %v895, %v912
        %v917 = vmul.f32 %v897, %v913
        %918 = vst.msk [vmem:[%s322] sm:$0xff] %vm873, %v914
        %v919 = vpack.c.bf16 %v914, %v914
        %920 = vrot.lane.b32.xlu0 %v429, 96
        %v921 = vpop.permute.xlu0 %920
        %v923 = vsel %vm873, %v919, 0
        %vm925 = vcmask 1045504
        %v927 = vsel %vm925, %v921, 0
        %929 = vmatpush.bf16.msra.mxu0 0
        %930 = vmatpush.bf16.msra.mxu0 0
        %931 = vmatpush.bf16.msra.mxu0 0
        %932 = vmatpush.bf16.msra.mxu0 0
        %933 = vmatpush.bf16.msra.mxu0 0
        %934 = vmatpush.bf16.msra.mxu0 0
        %935 = vmatpush.bf16.msra.mxu0 0
        %936 = vmatpush.bf16.msra.mxu0 %v927
        %937 = vmatmul.bf16.gmra.mxu0 %v923
        %v938 = vpop.f32.mrf.mxu0
        %v939 = vadd.f32 0.0, %v938
        %v940 = vpop.f32.mrf.mxu0
        %941 = vdwg.mxu0
        %s942 = scalar_lea.vmem %s322, 8 [#allocation4]
        %943 = vst.msk [vmem:[%s942] sm:$0xff] %vm873, %v915
        %v944 = vpack.c.bf16 %v915, %v915
        %945 = vrot.lane.b32.xlu0 %v429, 88
        %v946 = vpop.permute.xlu0 %945
        %v948 = vsel %vm873, %v944, 0
        %v951 = vsel %vm925, %v946, 0
        %953 = vmatpush.bf16.msra.mxu0 0
        %954 = vmatpush.bf16.msra.mxu0 0
        %955 = vmatpush.bf16.msra.mxu0 0
        %956 = vmatpush.bf16.msra.mxu0 0
        %957 = vmatpush.bf16.msra.mxu0 0
        %958 = vmatpush.bf16.msra.mxu0 0
        %959 = vmatpush.bf16.msra.mxu0 0
        %960 = vmatpush.bf16.msra.mxu0 %v951
        %961 = vmatmul.bf16.gmra.mxu0 %v948
        %v962 = vpop.f32.mrf.mxu0
        %v963 = vadd.f32 0.0, %v962
        %v964 = vpop.f32.mrf.mxu0
        %965 = vdwg.mxu0
        %s966 = scalar_lea.vmem %s322, 16 [#allocation4]
        %967 = vst.msk [vmem:[%s966] sm:$0xff] %vm873, %v916
        %v968 = vpack.c.bf16 %v916, %v916
        %969 = vrot.lane.b32.xlu0 %v429, 80
        %v970 = vpop.permute.xlu0 %969
        %v972 = vsel %vm873, %v968, 0
        %v975 = vsel %vm925, %v970, 0
        %977 = vmatpush.bf16.msra.mxu0 0
        %978 = vmatpush.bf16.msra.mxu0 0
        %979 = vmatpush.bf16.msra.mxu0 0
        %980 = vmatpush.bf16.msra.mxu0 0
        %981 = vmatpush.bf16.msra.mxu0 0
        %982 = vmatpush.bf16.msra.mxu0 0
        %983 = vmatpush.bf16.msra.mxu0 0
        %984 = vmatpush.bf16.msra.mxu0 %v975
        %985 = vmatmul.bf16.gmra.mxu0 %v972
        %v986 = vpop.f32.mrf.mxu0
        %v987 = vadd.f32 0.0, %v986
        %v988 = vpop.f32.mrf.mxu0
        %989 = vdwg.mxu0
        %s990 = scalar_lea.vmem %s322, 24 [#allocation4]
        %991 = vst.msk [vmem:[%s990] sm:$0xff] %vm873, %v917
        %v992 = vpack.c.bf16 %v917, %v917
        %993 = vrot.lane.b32.xlu0 %v429, 72
        %v994 = vpop.permute.xlu0 %993
        %v996 = vsel %vm873, %v992, 0
        %v999 = vsel %vm925, %v994, 0
        %1001 = vmatpush.bf16.msra.mxu0 0
        %1002 = vmatpush.bf16.msra.mxu0 0
        %1003 = vmatpush.bf16.msra.mxu0 0
        %1004 = vmatpush.bf16.msra.mxu0 0
        %1005 = vmatpush.bf16.msra.mxu0 0
        %1006 = vmatpush.bf16.msra.mxu0 0
        %1007 = vmatpush.bf16.msra.mxu0 0
        %1008 = vmatpush.bf16.msra.mxu0 %v999
        %1009 = vmatmul.bf16.gmra.mxu0 %v996
        %v1010 = vpop.f32.mrf.mxu0
        %v1011 = vadd.f32 0.0, %v1010
        %v1012 = vpop.f32.mrf.mxu0
        %1013 = vdwg.mxu0
        %1015 = vrot.lane.b32.xlu0 %v963, 8
        %v1016 = vpop.permute.xlu0 %1015
        %1019 = vrot.lane.b32.xlu0 %v987, 16
        %v1020 = vpop.permute.xlu0 %1019
        %1023 = vrot.lane.b32.xlu0 %v1011, 24
        %v1024 = vpop.permute.xlu0 %1023
        %v1026 = vsel %vm430, %v939, %v1016
        %vm1027 = vcmask 130048
        %v1028 = vsel %vm1027, %v1026, %v1020
        %vm1029 = vcmask 195584
        %v1030 = vsel %vm1029, %v1028, %v1024
        %v1031 = vpack.c.bf16 %v1030, %v1030
        %v1032 = vld [vmem:[%s2] sm:$0xf]
        %v1033 = vld [vmem:[%s2 + $0x4] sm:$0xf]
        %v1034 = vld [vmem:[%s2 + $0x8] sm:$0xf]
        %v1035 = vld [vmem:[%s2 + $0xc] sm:$0xf]
        %v1040 = vunpack.c.l.b16 %v1032
        %v1041 = vunpack.c.l.b16 %v1033
        %v1042 = vunpack.c.l.b16 %v1034
        %v1043 = vunpack.c.l.b16 %v1035
        %v1044 = vpack.c.b16 %v1041, %v1040
        %v1045 = vpack.c.b16 %v1043, %v1042
        %v1049 = vsel %vm356, %v1031, 0
        %1051 = vmatpush.bf16.msra.mxu0 0
        %1052 = vmatpush.bf16.msra.mxu0 0
        %1053 = vmatpush.bf16.msra.mxu0 0
        %1054 = vmatpush.bf16.msra.mxu0 0
        %1055 = vmatpush.bf16.msra.mxu0 0
        %1056 = vmatpush.bf16.msra.mxu0 0
        %1057 = vmatpush.bf16.msra.mxu0 %v1045
        %1058 = vmatpush.bf16.msra.mxu0 %v1044
        %1059 = vmatmul.bf16.gmra.mxu0 %v1049
        %v1060 = vpop.f32.mrf.mxu0
        %v1061 = vadd.f32 0.0, %v1060
        %v1062 = vpop.f32.mrf.mxu0
        %1063 = vdwg.mxu0
        %1064 = vst.msk [vmem:[%s315] sm:$0xff] %vm356, %v1061
        %s1065 = sand.u32 %s191, 1
        %s1066 = scalar_lea.sflag [#allocation3], %s1065
        %s1067 = sand.u32 %s191, 1
        %s1068 = smul.addr %s1067, 8
        %s1069 = scalar_lea.vmem [#allocation2], %s1068
        %s1070 = sand.u32 %s217, 1
        %s1071 = scalar_lea.sflag [#allocation5], %s1070
        %s1072 = sand.u32 %s217, 1
        %s1073 = smul.addr %s1072, 32
        %s1074 = scalar_lea.vmem [#allocation4], %s1073
        // Predicated region
        $region49: #{tpu_custom_call.1} parent=47 // pred_check
          %p1075 = pneg %p201
        $region50: #{tpu_custom_call.1} parent=47 // pred_check_branch
          %1077 = sbr.rel (%p1075) target = $region52
        $region51: #{tpu_custom_call.1} parent=47 // pred_region
          %1079 = vsyncadd %s1066, 0
          %s1080 = smul.addr %s26, 8
          %s1081 = scalar_lea.hbm %s7, %s1080
          %s1083 = sshll.u32 %s1069, 4
          %s1084 = int_to_ptr.vmem [resolvable:$true] %s1083
          %s1085 = sshll.u32 %s1081, 4
          %s1086 = int_to_ptr.hbm [resolvable:$true] %s1085
          %1088 = dma.vmem_to_hbm [thread:$0]  %s1084, 128, %s1086, %s1066
        $region52: #{tpu_custom_call.1} parent=47 // pred_fallthru
          _
        // Predicated region
        $region53: #{tpu_custom_call.1} parent=47 // pred_check
          %p1089 = pneg %p227
        $region54: #{tpu_custom_call.1} parent=47 // pred_check_branch
          %1091 = sbr.rel (%p1089) target = $region56
        $region55: #{tpu_custom_call.1} parent=47 // pred_region
          %1093 = vsyncadd %s1071, 0
          %s1094 = smul.addr %s26, 4
          %s1095 = smul.addr %s1094, 8
          %s1096 = scalar_lea.hbm %s8, %s1095
          %s1097 = sshll.u32 %s1074, 4
          %s1098 = int_to_ptr.vmem [resolvable:$true] %s1097
          %s1099 = sshll.u32 %s1096, 4
          %s1100 = int_to_ptr.hbm [resolvable:$true] %s1099
          %1105 = dma.vmem_to_hbm [thread:$0]  %s1098, 512, %s1100, %s1071, 128, 128, 8
        $region56: #{tpu_custom_call.1} parent=47 // pred_fallthru
          _
      $region48: #{tpu_custom_call.1} parent=5 // pred_fallthru
        _
      %p1106 = scmp.le.s32.totalorder 2, %s21
      // Predicated region
      $region57: #{tpu_custom_call.1} parent=5 // pred_check
        %p1107 = pneg %p1106
      $region58: #{tpu_custom_call.1} parent=5 // pred_check_branch
        %1109 = sbr.rel (%p1107) target = $region60
      $region59: #{tpu_custom_call.1} parent=5 // pred_region
        %s1110 = ssub.s32 %s21, 2
        // Predicated region
        $region61: #{tpu_custom_call.1} parent=59 // pred_check
          %p1111 = pneg %p207
        $region62: #{tpu_custom_call.1} parent=59 // pred_check_branch
          %1113 = sbr.rel (%p1111) target = $region64
        $region63: #{tpu_custom_call.1} parent=59 // pred_region
          %s1114 = sand.u32 %s192, 1
          %s1115 = scalar_lea.sflag [#allocation3], %s1114
          %s1116 = sand.u32 %s192, 1
          %s1117 = smul.addr %s1116, 8
          %s1118 = scalar_lea.vmem [#allocation2], %s1117
          %1120 = dma.done %s1115, 128
        $region64: #{tpu_custom_call.1} parent=59 // pred_fallthru
          _
        // Predicated region
        $region65: #{tpu_custom_call.1} parent=59 // pred_check
          %p1121 = pneg %p233
        $region66: #{tpu_custom_call.1} parent=59 // pred_check_branch
          %1123 = sbr.rel (%p1121) target = $region68
        $region67: #{tpu_custom_call.1} parent=59 // pred_region
          %s1124 = sand.u32 %s218, 1
          %s1125 = scalar_lea.sflag [#allocation5], %s1124
          %s1126 = sand.u32 %s218, 1
          %s1127 = smul.addr %s1126, 32
          %s1128 = scalar_lea.vmem [#allocation4], %s1127
          %1130 = dma.done %s1125, 512
        $region68: #{tpu_custom_call.1} parent=59 // pred_fallthru
          _
      $region60: #{tpu_custom_call.1} parent=5 // pred_fallthru
        _
    $region6: #{tpu_custom_call.1} parent=1 // loop_footer
      %s25 = sadd.s32 1, %s21
    $region7: #{tpu_custom_call.1} parent=1 // loop_footer_branch
      %20 = sbr.rel target = $region3
    $region8: #{tpu_custom_call.1} parent=1 // loop_exit
      _
    %1131 = vsyncpa [#allocation3], 1
    %s1132 = scalar_lea.sflag [#allocation3], 1
    %1133 = vsyncpa %s1132, 1
    %1134 = vsyncpa [#allocation5], 1
    %s1135 = scalar_lea.sflag [#allocation5], 1
    %1136 = vsyncpa %s1135, 1

</llo_original>
